<compile_context>
chip_gen: v6e
topology: v6e:2x2x1
jax: 0.10.0
libtpu: 0.0.40
codegen_flags: <defaults>
</compile_context>

<pallas_src>
import functools
import math

import jax
import jax.numpy as jnp
from jax import lax
from jax.experimental import pallas as pl
from jax.experimental.pallas import tpu as pltpu

_VMEM_LIMIT_BYTES = 32 * 1024 * 1024       # explicit scoped-VMEM limit, safe on v5e/v6e/v7x
_LINEAR_WS_BUDGET = 24 * 1024 * 1024       # double-buffered working-set budget (v7x-safe)
_RESIDENT_FILT_BUDGET = 4 * 1024 * 1024    # padded filt bytes allowed to sit resident in VMEM


def _round_up(x, m):
    return (x + m - 1) // m * m


# ----------------------------------------------------------------------------
# acos approximation (Abramowitz & Stegun 4.4.46, |abs err| ~3e-8).
# Stays on guaranteed VPU primitives (abs / mul / add / sqrt / where).
# ----------------------------------------------------------------------------
_ACOS_COEFFS = (
    -0.0012624911, 0.0066700901, -0.0170881256, 0.0308918810,
    -0.0501743046, 0.0889789874, -0.2145988016, 1.5707963050,
)


def _acos(x):
    ax = jnp.abs(x)
    p = jnp.float32(_ACOS_COEFFS[0])
    for c in _ACOS_COEFFS[1:]:
        p = p * ax + jnp.float32(c)
    r = jnp.sqrt(jnp.maximum(1.0 - ax, 0.0)) * p            # acos(|x|)
    return jnp.where(x >= 0, r, jnp.float32(math.pi) - r)   # acos(x) = pi - acos(-x)


# ----------------------------------------------------------------------------
# Kernel 1: tiled linear layer  y = x @ W.T + b   (bf16 in, f32 accumulate)
# ----------------------------------------------------------------------------
def _linear_kernel(x_ref, w_ref, b_ref, o_ref):
    @pl.when(pl.program_id(2) == 0)
    def _():
        # init the resident f32 output block with the broadcast bias
        o_ref[...] = jnp.zeros_like(o_ref) + b_ref[...]

    # (tm, tk) @ (tk, tn) -> (tm, tn) on the MXU; bf16 inputs, f32 accumulate
    o_ref[...] += lax.dot_general(
        x_ref[...], w_ref[...],
        dimension_numbers=(((1,), (0,)), ((), ())),
        preferred_element_type=jnp.float32,
    )


def _pick_linear_m_tile(B, tn, tk, budget=_LINEAR_WS_BUDGET):
    """Whole-batch M tile when the double-buffered working set fits the budget."""
    tm = min(_round_up(B, 8), 1024)

    def ws(tm_):
        # bf16 x + bf16 w + f32 bias + f32 out, all double-buffered
        return 2 * (tm_ * tk * 2 + tk * tn * 2 + tn * 4 + tm_ * tn * 4)

    while ws(tm) > budget and tm > 128:
        tm = _round_up(max(128, tm // 2), 8)
    return tm


def linear_pallas(x, params, *, tm_override=None):
    wT, bp = params["wT"], params["bias"]
    OUT = params["out_features"]
    tn, tk = params["lin_tn"], params["lin_tk"]

    B, IN = x.shape
    INp, OUTp = wT.shape

    tm = tm_override if tm_override is not None else _pick_linear_m_tile(B, tn, tk)
    Bp = _round_up(B, tm)

    xp = jnp.pad(x.astype(jnp.float32),
                 ((0, Bp - B), (0, INp - IN))).astype(jnp.bfloat16)

    grid = (Bp // tm, OUTp // tn, INp // tk)

    yp = pl.pallas_call(
        _linear_kernel,
        out_shape=jax.ShapeDtypeStruct((Bp, OUTp), jnp.float32),
        grid_spec=pltpu.PrefetchScalarGridSpec(
            num_scalar_prefetch=0,
            grid=grid,
            in_specs=[
                pl.BlockSpec((tm, tk), lambda i, j, k: (i, k)),
                pl.BlockSpec((tk, tn), lambda i, j, k: (k, j)),
                pl.BlockSpec((1, tn), lambda i, j, k: (0, j)),
            ],
            out_specs=pl.BlockSpec((tm, tn), lambda i, j, k: (i, j)),
        ),
        compiler_params=pltpu.CompilerParams(
            # NOTE(v7x): when tm covers the whole batch the M axis collapses to
            # one block; the OUT axis stays "parallel" so megacore can still
            # shard kernel 1 across two TensorCores whenever OUTp/tn >= 2.
            dimension_semantics=("parallel", "parallel", "arbitrary"),
            vmem_limit_bytes=_VMEM_LIMIT_BYTES),
    )(xp, wT, bp)

    return yp[:B, :OUT]


# ----------------------------------------------------------------------------
# Kernel 2: ThomsonFinal(power='a2') loss on filt = weight.view(-1, n_filt).
# ----------------------------------------------------------------------------
def _pair_tile_loss(gram, sq_i, sq_j, row0, col0, n_filt):
    """Masked sum of acos(inner)^-2 over one (tn_i, tn_j) Gram tile."""
    tn_i, tn_j = gram.shape
    norm_i = jnp.sqrt(sq_i) + jnp.float32(1e-4)       # (1, tn_i)
    norm_j = jnp.sqrt(sq_j) + jnp.float32(1e-4)       # (1, tn_j)
    # outer(norm_i, norm_j) via a K=1 MXU matmul (no in-kernel transpose)
    norm_mat = lax.dot_general(
        norm_i, norm_j, dimension_numbers=(((0,), (0,)), ((), ())),
        preferred_element_type=jnp.float32) + jnp.float32(1e-6)

    # EUP reciprocal + one Newton step ~= exact f32 divide; the +1e-6 epsilon
    # is applied to the norm product exactly as in the torch reference.
    inv_nm = pl.reciprocal(norm_mat, approx=True)
    inv_nm = inv_nm * (jnp.float32(2.0) - norm_mat * inv_nm)
    inner = gram * inv_nm

    ac = _acos(inner) * jnp.float32(1.0 / math.pi) + jnp.float32(1e-4)
    d = ac * ac
    r = pl.reciprocal(d, approx=True)                 # acos^-2 on the EUP
    r = r * (jnp.float32(2.0) - d * r)                # Newton refine

    # final = final - triu(final, -1)  ==> keep entries with col <= row-2,
    # plus mask out zero-padded filters (row >= n_filt).
    row = row0 + lax.broadcasted_iota(jnp.int32, (tn_i, tn_j), 0)
    col = col0 + lax.broadcasted_iota(jnp.int32, (tn_i, tn_j), 1)
    keep = (col < row - 1) & (row < n_filt)
    return jnp.sum(jnp.where(keep, r, jnp.float32(0.0)))


def _thomson_a2_resident_kernel(ti_ref, tj_ref, sq_ref, filt_ref, out_ref,
                                *, n_filt, tn):
    # filt is resident in VMEM as (nt, Kp, tn); whole-K Gram tile per pair.
    p = pl.program_id(0)
    ti = ti_ref[p]
    tj = tj_ref[p]

    fi = filt_ref[ti]          # (Kp, tn)  column block of the Gram row-block
    fj = filt_ref[tj]          # (Kp, tn)  column block of the Gram col-block

    gram = lax.dot_general(
        fi, fj, dimension_numbers=(((0,), (0,)), ((), ())),
        preferred_element_type=jnp.float32)

    part = _pair_tile_loss(gram, sq_ref[ti], sq_ref[tj],
                           ti * tn, tj * tn, n_filt)
    out_ref[...] = part + jnp.zeros_like(out_ref)      # lane-dense write


def _thomson_a2_streamed_kernel(ti_ref, tj_ref, fi_ref, fj_ref,
                                sqi_ref, sqj_ref, out_ref, gram_ref,
                                *, n_filt, tn):
    # Fallback for weights too large to hold resident: pipelined K reduction.
    p = pl.program_id(0)
    k = pl.program_id(1)

    @pl.when(k == 0)
    def _():
        gram_ref[...] = jnp.zeros_like(gram_ref)

    gram_ref[...] += lax.dot_general(
        fi_ref[...], fj_ref[...],
        dimension_numbers=(((0,), (0,)), ((), ())),
        preferred_element_type=jnp.float32)

    @pl.when(k == pl.num_programs(1) - 1)
    def _():
        part = _pair_tile_loss(gram_ref[...], sqi_ref[...], sqj_ref[...],
                               ti_ref[p] * tn, tj_ref[p] * tn, n_filt)
        out_ref[...] = part + jnp.zeros_like(out_ref)   # lane-dense write


def prepare_thomson_filt(w, *, tn=None, tk=512, force_streamed=False,
                         resident_budget=_RESIDENT_FILT_BUDGET):
    """One-time prep: torch .view(-1, n_filt) reshape, pad, precompute norms."""
    N = w.shape[0]
    # torch: weight.view(-1, out_features) -> row-major reshape, NOT a transpose
    filt = w.astype(jnp.float32).reshape(-1, N)
    K = filt.shape[0]

    if tn is None:
        tn = min(256, _round_up(N, 128))
    tn = min(tn, _round_up(N, 128))
    Np = _round_up(N, tn)
    nt = Np // tn

    Kp_res = _round_up(K, 8)
    resident = (not force_streamed) and (Kp_res * Np * 4 <= resident_budget)

    if resident:
        Kp = Kp_res
        fp = jnp.pad(filt, ((0, Kp - K), (0, Np - N)))
        sq = jnp.sum(fp * fp, axis=0, keepdims=True)            # (1, Np)
        fblk = fp.reshape(Kp, nt, tn).transpose(1, 0, 2)        # (nt, Kp, tn)
        sqblk = sq.reshape(1, nt, tn).transpose(1, 0, 2)        # (nt, 1, tn)
        data = (fblk, sqblk)
        tk_used = Kp
    else:
        tk_used = min(tk, _round_up(K, 8))
        Kp = _round_up(K, tk_used)
        fp = jnp.pad(filt, ((0, Kp - K), (0, Np - N)))
        sq = jnp.sum(fp * fp, axis=0, keepdims=True)            # (1, Np)
        data = (fp, sq)

    meta = dict(n_filt=N, tn=tn, tk=tk_used, nt=nt, Kp=Kp, resident=resident)
    return data, meta


def thomson_a2_pallas(data, meta):
    n_filt, tn, nt = meta["n_filt"], meta["tn"], meta["nt"]

    pairs = [(i, j) for i in range(nt) for j in range(i + 1)]    # j <= i only
    ti = jnp.asarray([i for i, _ in pairs], dtype=jnp.int32)
    tj = jnp.asarray([j for _, j in pairs], dtype=jnp.int32)
    n_pairs = len(pairs)

    if meta["resident"]:
        fblk, sqblk = data
        Kp = fblk.shape[1]
        kernel = functools.partial(_thomson_a2_resident_kernel,
                                   n_filt=n_filt, tn=tn)
        partials = pl.pallas_call(
            kernel,
            out_shape=jax.ShapeDtypeStruct((n_pairs, 8, 128), jnp.float32),
            grid_spec=pltpu.PrefetchScalarGridSpec(
                num_scalar_prefetch=2,
                grid=(n_pairs,),
                in_specs=[
                    # constant block index -> fetched once, stays VMEM-resident
                    pl.BlockSpec((nt, 1, tn), lambda p, ti_r, tj_r: (0, 0, 0)),
                    pl.BlockSpec((nt, Kp, tn), lambda p, ti_r, tj_r: (0, 0, 0)),
                ],
                out_specs=pl.BlockSpec((1, 8, 128),
                                       lambda p, ti_r, tj_r: (p, 0, 0)),
            ),
            compiler_params=pltpu.CompilerParams(
                dimension_semantics=("parallel",),
                vmem_limit_bytes=_VMEM_LIMIT_BYTES),
        )(ti, tj, sqblk, fblk)
    else:
        fp, sq = data
        tk = meta["tk"]
        nk = meta["Kp"] // tk
        kernel = functools.partial(_thomson_a2_streamed_kernel,
                                   n_filt=n_filt, tn=tn)
        partials = pl.pallas_call(
            kernel,
            out_shape=jax.ShapeDtypeStruct((n_pairs, 8, 128), jnp.float32),
            grid_spec=pltpu.PrefetchScalarGridSpec(
                num_scalar_prefetch=2,
                grid=(n_pairs, nk),
                in_specs=[
                    pl.BlockSpec((tk, tn), lambda p, k, ti_r, tj_r: (k, ti_r[p])),
                    pl.BlockSpec((tk, tn), lambda p, k, ti_r, tj_r: (k, tj_r[p])),
                    pl.BlockSpec((1, tn), lambda p, k, ti_r, tj_r: (0, ti_r[p])),
                    pl.BlockSpec((1, tn), lambda p, k, ti_r, tj_r: (0, tj_r[p])),
                ],
                out_specs=pl.BlockSpec((1, 8, 128),
                                       lambda p, k, ti_r, tj_r: (p, 0, 0)),
                scratch_shapes=[pltpu.VMEM((tn, tn), jnp.float32)],
            ),
            compiler_params=pltpu.CompilerParams(
                dimension_semantics=("parallel", "arbitrary"),
                vmem_limit_bytes=_VMEM_LIMIT_BYTES),
        )(ti, tj, fp, fp, sq, sq)

    total = jnp.sum(partials[:, 0, 0])
    cnt = n_filt * (n_filt - 1) / 2.0 + 1e-8
    return total / jnp.float32(cnt)


# ----------------------------------------------------------------------------
# ThomsonLinear: one-time weight prep + forward
# ----------------------------------------------------------------------------
def thomson_linear_init(w, b, *, linear_tn=None, linear_tk=None,
                        thomson_tn=None, thomson_tk=512,
                        force_streamed_thomson=False):
    OUT, IN = w.shape
    tn = linear_tn if linear_tn is not None else min(256, _round_up(OUT, 128))
    tk = linear_tk if linear_tk is not None else min(1024, _round_up(IN, 128))

    INp, OUTp = _round_up(IN, tk), _round_up(OUT, tn)
    # One-time weight prep (hoisted out of the per-forward path):
    # pad -> transpose to (IN, OUT) so the kernel RHS block is (tk, tn) and the
    # dot contracts ((1,),(0,)) with no per-tile XLU transpose -> cast to bf16.
    wT = jnp.pad(w.astype(jnp.float32).T,
                 ((0, INp - IN), (0, OUTp - OUT))).astype(jnp.bfloat16)
    bp = jnp.pad(b.astype(jnp.float32), (0, OUTp - OUT)).reshape(1, OUTp)

    th_data, th_meta = prepare_thomson_filt(
        w, tn=thomson_tn, tk=thomson_tk, force_streamed=force_streamed_thomson)

    return dict(wT=wT, bias=bp, out_features=OUT, in_features=IN,
                lin_tn=tn, lin_tk=tk, th_data=th_data, th_meta=th_meta)


def thomson_linear_forward(x, params, training=True, *, linear_tm=None):
    y = linear_pallas(x, params, tm_override=linear_tm)
    if training:
        th = thomson_a2_pallas(params["th_data"], params["th_meta"])
    else:
        th = jnp.float32(0.0)
    return y, th


# ----------------------------------------------------------------------------
# Pure-JAX reference (mirrors the torch module) for sanity checks.
# ----------------------------------------------------------------------------
def _reference_forward(x, w, b):
    y = x @ w.T + b
    n = w.shape[0]
    filt = w.reshape(-1, n)
    fn = jnp.sqrt(jnp.sum(filt * filt, axis=0, keepdims=True)) + 1e-4
    nm = fn.T @ fn + 1e-6
    inner = (filt.T @ filt) / nm
    ac = jnp.arccos(inner) / math.pi + 1e-4
    fin = ac ** (-2.0)
    final = fin - jnp.triu(fin, -1)
    cnt = n * (n - 1) / 2.0 + 1e-8
    return y, final.sum() / cnt


if __name__ == "__main__":
    key = jax.random.PRNGKey(0)

    # --- Test 1: small shapes, VMEM-resident Thomson path --------------------
    B, IN, OUT = 8, 32, 16
    k1, k2, k3, key = jax.random.split(key, 4)
    bound = 1.0 / math.sqrt(IN)
    x = jax.random.normal(k1, (B, IN), dtype=jnp.float32)
    w = jax.random.uniform(k2, (OUT, IN), dtype=jnp.float32, minval=-bound, maxval=bound)
    b = jax.random.uniform(k3, (OUT,), dtype=jnp.float32, minval=-bound, maxval=bound)

    params = thomson_linear_init(w, b)
    y, th = thomson_linear_forward(x, params, training=True)
    jax.block_until_ready((y, th))
    assert y.shape == (B, OUT) and th.shape == ()

    y_ref, th_ref = _reference_forward(x, w, b)
    assert bool(jnp.allclose(y, y_ref, rtol=2e-2, atol=2e-2)), "linear mismatch (small)"
    assert bool(jnp.allclose(th, th_ref, rtol=5e-3, atol=1e-4)), "thomson mismatch (resident)"

    # --- Test 2: larger shapes -> multi-tile grids, both Thomson paths -------
    B2, IN2, OUT2 = 260, 300, 200
    k1, k2, k3, key = jax.random.split(key, 4)
    bound2 = 1.0 / math.sqrt(IN2)
    x2 = jax.random.normal(k1, (B2, IN2), dtype=jnp.float32)
    w2 = jax.random.uniform(k2, (OUT2, IN2), dtype=jnp.float32, minval=-bound2, maxval=bound2)
    b2 = jax.random.uniform(k3, (OUT2,), dtype=jnp.float32, minval=-bound2, maxval=bound2)

    y2_ref, th2_ref = _reference_forward(x2, w2, b2)

    # resident Thomson with 2x2 triangular tiles + fully tiled linear grid
    params2 = thomson_linear_init(w2, b2, linear_tn=128, linear_tk=128, thomson_tn=128)
    y2, th2 = thomson_linear_forward(x2, params2, training=True, linear_tm=128)
    jax.block_until_ready((y2, th2))
    assert bool(jnp.allclose(y2, y2_ref, rtol=2e-2, atol=2e-2)), "linear mismatch (tiled)"
    assert bool(jnp.allclose(th2, th2_ref, rtol=5e-3, atol=1e-4)), "thomson mismatch (resident multi-tile)"

    # streamed (HBM-pipelined K-reduction) Thomson fallback
    params2s = thomson_linear_init(w2, b2, thomson_tn=128, thomson_tk=64,
                                   force_streamed_thomson=True)
    _, th2s = thomson_linear_forward(x2, params2s, training=True)
    jax.block_until_ready(th2s)
    assert bool(jnp.allclose(th2s, th2_ref, rtol=5e-3, atol=1e-4)), "thomson mismatch (streamed)"

    # eval mode: (y, 0)
    y_eval, th_eval = thomson_linear_forward(x, params, training=False)
    jax.block_until_ready(y_eval)
    assert float(th_eval) == 0.0

    print("KERNEL_OK")
</pallas_src>

<mosaic_0001>
module attributes {stable_mosaic.version = 11 : i64} {
  func.func @_linear_kernel(%arg0: i32, %arg1: i32, %arg2: i32, %arg3: memref<8x128xbf16, #tpu.memory_space<vmem>>, %arg4: memref<128x128xbf16, #tpu.memory_space<vmem>>, %arg5: memref<1x128xf32, #tpu.memory_space<vmem>>, %arg6: memref<8x128xf32, #tpu.memory_space<vmem>>) attributes {dimension_semantics = [#tpu.dimension_semantics<parallel>, #tpu.dimension_semantics<parallel>, #tpu.dimension_semantics<arbitrary>], iteration_bounds = array<i64: 1, 1, 1>, scalar_prefetch = 0 : i64, scratch_operands = 0 : i64, tpu.core_type = #tpu.core_type<tc>, window_params = [{transform_indices = @transform_0, window_bounds = array<i64: 8, 128>}, {transform_indices = @transform_1, window_bounds = array<i64: 128, 128>}, {transform_indices = @transform_2, window_bounds = array<i64: 1, 128>}, {transform_indices = @transform_3, window_bounds = array<i64: 8, 128>}]} {
    %c0_i32 = arith.constant 0 : i32
    %0 = arith.cmpi eq, %arg2, %c0_i32 : i32
    %1 = arith.extui %0 : i1 to i32
    %c0_i32_0 = arith.constant 0 : i32
    %2 = arith.cmpi ne, %1, %c0_i32_0 : i32
    scf.if %2 {
      %cst_8 = arith.constant 0.000000e+00 : f32
      %9 = vector.broadcast %cst_8 : f32 to vector<8x128xf32>
      %c0_9 = arith.constant 0 : index
      %c0_10 = arith.constant 0 : index
      %10 = vector.load %arg5[%c0_9, %c0_10] : memref<1x128xf32, #tpu.memory_space<vmem>>, vector<1x128xf32>
      %11 = vector.broadcast %10 : vector<1x128xf32> to vector<8x128xf32>
      %12 = arith.addf %9, %11 : vector<8x128xf32>
      %c0_11 = arith.constant 0 : index
      %c0_12 = arith.constant 0 : index
      %13 = vector.load %arg6[%c0_11, %c0_12] : memref<8x128xf32, #tpu.memory_space<vmem>>, vector<8x128xf32>
      tpu.vector_store %arg6[%c0_11, %c0_12], %12 {strides = array<i32>} : memref<8x128xf32, #tpu.memory_space<vmem>>, vector<8x128xf32>,
    } else {
    }
    %c0 = arith.constant 0 : index
    %c0_1 = arith.constant 0 : index
    %3 = vector.load %arg6[%c0, %c0_1] : memref<8x128xf32, #tpu.memory_space<vmem>>, vector<8x128xf32>
    %c0_2 = arith.constant 0 : index
    %c0_3 = arith.constant 0 : index
    %4 = vector.load %arg3[%c0_2, %c0_3] : memref<8x128xbf16, #tpu.memory_space<vmem>>, vector<8x128xbf16>
    %c0_4 = arith.constant 0 : index
    %c0_5 = arith.constant 0 : index
    %5 = vector.load %arg4[%c0_4, %c0_5] : memref<128x128xbf16, #tpu.memory_space<vmem>>, vector<128x128xbf16>
    %cst = arith.constant dense<0.000000e+00> : vector<8x128xf32>
    %6 = tpu.matmul %4, %5, %cst {dimension_numbers = #tpu.dot_dimension_numbers<[1], [0], [0], [1], [0, 0, 1, 1], [], []>} : vector<8x128xbf16>, vector<128x128xbf16>, vector<8x128xf32> -> vector<8x128xf32>
    %7 = arith.addf %3, %6 : vector<8x128xf32>
    %c0_6 = arith.constant 0 : index
    %c0_7 = arith.constant 0 : index
    %8 = vector.load %arg6[%c0_6, %c0_7] : memref<8x128xf32, #tpu.memory_space<vmem>>, vector<8x128xf32>
    tpu.vector_store %arg6[%c0_6, %c0_7], %7 {strides = array<i32>} : memref<8x128xf32, #tpu.memory_space<vmem>>, vector<8x128xf32>,
    return
  }
  func.func @transform_0(%arg0: i32, %arg1: i32, %arg2: i32) -> (i32, i32) {
    %c0_i32 = arith.constant 0 : i32
    return %arg0, %arg2 : i32, i32
  }
  func.func @transform_1(%arg0: i32, %arg1: i32, %arg2: i32) -> (i32, i32) {
    %c0_i32 = arith.constant 0 : i32
    return %arg2, %arg1 : i32, i32
  }
  func.func @transform_2(%arg0: i32, %arg1: i32, %arg2: i32) -> (i32, i32) {
    %c0_i32 = arith.constant 0 : i32
    %c0_i32_0 = arith.constant 0 : i32
    return %c0_i32, %arg1 : i32, i32
  }
  func.func @transform_3(%arg0: i32, %arg1: i32, %arg2: i32) -> (i32, i32) {
    %c0_i32 = arith.constant 0 : i32
    return %arg0, %arg1 : i32, i32
  }
}

</mosaic_0001>

<llo_original>
// kernel: tpu_custom_call.1
$region0: #{tpu_custom_call.1}
  #allocation0 [shape = 'u32[]', space=smem, size = 0x4, offset = 0x4, fixed_abs, tag = 'smem constant byte address 0x4 - core index']
  #allocation1 [shape = 'u32[144,128]{1,0:T(1,128)}', space=vmem, size = 0x12000, scoped, tag = 'internal scratch']
  %s0 = inlined_call_operand.hbm [shape: bf16[8,128], index: 0, kind: input, shape index: {}]
  %s1 = inlined_call_operand.hbm [shape: bf16[128,128], index: 1, kind: input, shape index: {}]
  %s2 = inlined_call_operand.vmem [shape: f32[1,128], index: 2, kind: input, shape index: {}]
  %s3 = inlined_call_operand.hbm [shape: f32[8,128], index: 3, kind: output, shape index: {}]
  %s4 = sld [smem:[#allocation0]]
  $region34: #{tpu_custom_call.1} parent=0
    _
  %s6 = ssub.s32 1, %s4
  %s7 = scalar_select 0, %s6, %s4
  $region1: #{tpu_custom_call.1} parent=0
    #allocation2 [shape = 'u8[2048]{0}', space=vmem, size = 0x800, scoped, tag = 'input window, operand 0, single buffered']
    #allocation3 [shape = 's32[1]{0}', space=sflag, size = 0x4, scoped, tag = 'scoped memory for tpu_custom_call.1']
    #allocation4 [shape = 's32[1]{0}', space=sflag, size = 0x4, scoped, tag = 'scoped memory for tpu_custom_call.1']
    #allocation5 [shape = 'u8[32768]{0}', space=vmem, size = 0x8000, scoped, tag = 'input window, operand 1, single buffered']
    #allocation6 [shape = 's32[1]{0}', space=sflag, size = 0x4, scoped, tag = 'scoped memory for tpu_custom_call.1']
    #allocation7 [shape = 'u8[4096]{0}', space=vmem, size = 0x1000, scoped, tag = 'output window, operand 0, single buffered']
    %8 = vsyncpa [#allocation3], 0
    %9 = vsyncpa [#allocation6], 0
    %10 = vsyncpa [#allocation4], 0
    // Predicated region
    $region2: #{tpu_custom_call.1} parent=1 // pred_check
      _
    $region3: #{tpu_custom_call.1} parent=1 // pred_check_branch
      %12 = sbr.rel (0) target = $region5
    $region4: #{tpu_custom_call.1} parent=1 // pred_region
      %s14 = ssub.s32 64, 64
      %15 = vsyncadd [#allocation3], %s14
      %s17 = sshll.u32 [#allocation2], 4
      %s18 = int_to_ptr.vmem [resolvable:$true] %s17
      %20 = dma.hbm_to_vmem [thread:$0]  %s0, 64, %s18, [#allocation3]
    $region5: #{tpu_custom_call.1} parent=1 // pred_fallthru
      _
    // Predicated region
    $region6: #{tpu_custom_call.1} parent=1 // pred_check
      _
    $region7: #{tpu_custom_call.1} parent=1 // pred_check_branch
      %22 = sbr.rel (0) target = $region9
    $region8: #{tpu_custom_call.1} parent=1 // pred_region
      %s24 = ssub.s32 1024, 1024
      %25 = vsyncadd [#allocation6], %s24
      %s26 = sshll.u32 [#allocation5], 4
      %s27 = int_to_ptr.vmem [resolvable:$true] %s26
      %32 = dma.hbm_to_vmem [thread:$0]  %s1, 1024, %s27, [#allocation6], 64, 64, 4
    $region9: #{tpu_custom_call.1} parent=1 // pred_fallthru
      _
    // Predicated region
    $region10: #{tpu_custom_call.1} parent=1 // pred_check
      _
    $region11: #{tpu_custom_call.1} parent=1 // pred_check_branch
      %34 = sbr.rel (0) target = $region13
    $region12: #{tpu_custom_call.1} parent=1 // pred_region
      _
    $region13: #{tpu_custom_call.1} parent=1 // pred_fallthru
      _
    // Predicated region
    $region14: #{tpu_custom_call.1} parent=1 // pred_check
      _
    $region15: #{tpu_custom_call.1} parent=1 // pred_check_branch
      %36 = sbr.rel (0) target = $region17
    $region16: #{tpu_custom_call.1} parent=1 // pred_region
      %37 = dma.done [#allocation3], 64
    $region17: #{tpu_custom_call.1} parent=1 // pred_fallthru
      _
    // Predicated region
    $region18: #{tpu_custom_call.1} parent=1 // pred_check
      _
    $region19: #{tpu_custom_call.1} parent=1 // pred_check_branch
      %39 = sbr.rel (0) target = $region21
    $region20: #{tpu_custom_call.1} parent=1 // pred_region
      %40 = dma.done [#allocation6], 1024
    $region21: #{tpu_custom_call.1} parent=1 // pred_fallthru
      _
    %p42 = scmp.eq.s32.totalorder 0, 0
    // Predicated region
    $region22: #{tpu_custom_call.1} parent=1 // pred_check
      %p43 = pneg %p42
    $region23: #{tpu_custom_call.1} parent=1 // pred_check_branch
      %45 = sbr.rel (%p43) target = $region25
    $region24: #{tpu_custom_call.1} parent=1 // pred_region
      %v46 = vld [vmem:[%s2] sm:$0x1]
      %v48 = vlaneseq
      %v49 = vshrl.u32 %v48, 7
      %v50 = vsub.s32 0, %v49
      %v51 = vrot.slane %v46, %v50
      %v53 = vadd.f32 %v51, 0.0
      %54 = vst [vmem:[#allocation7] sm:$0xff] %v53
    $region25: #{tpu_custom_call.1} parent=1 // pred_fallthru
      _
    %v55 = vld [vmem:[#allocation7] sm:$0xff]
    %v56 = vld [vmem:[#allocation2] sm:$0xf]
    %v57 = vld [vmem:[#allocation5] sm:$0xf]
    %v58 = vld [vmem:[#allocation5 + $0x4] sm:$0xf]
    %v59 = vld [vmem:[#allocation5 + $0x8] sm:$0xf]
    %v60 = vld [vmem:[#allocation5 + $0xc] sm:$0xf]
    %v61 = vld [vmem:[#allocation5 + $0x10] sm:$0xf]
    %v62 = vld [vmem:[#allocation5 + $0x14] sm:$0xf]
    %v63 = vld [vmem:[#allocation5 + $0x18] sm:$0xf]
    %v64 = vld [vmem:[#allocation5 + $0x1c] sm:$0xf]
    %v65 = vld [vmem:[#allocation5 + $0x20] sm:$0xf]
    %v66 = vld [vmem:[#allocation5 + $0x24] sm:$0xf]
    %v67 = vld [vmem:[#allocation5 + $0x28] sm:$0xf]
    %v68 = vld [vmem:[#allocation5 + $0x2c] sm:$0xf]
    %v69 = vld [vmem:[#allocation5 + $0x30] sm:$0xf]
    %v70 = vld [vmem:[#allocation5 + $0x34] sm:$0xf]
    %v71 = vld [vmem:[#allocation5 + $0x38] sm:$0xf]
    %v72 = vld [vmem:[#allocation5 + $0x3c] sm:$0xf]
    %v89 = vunpack.c.l.b16 %v57
    %v90 = vunpack.c.l.b16 %v58
    %v91 = vunpack.c.l.b16 %v59
    %v92 = vunpack.c.l.b16 %v60
    %v93 = vunpack.c.l.b16 %v61
    %v94 = vunpack.c.l.b16 %v62
    %v95 = vunpack.c.l.b16 %v63
    %v96 = vunpack.c.l.b16 %v64
    %v97 = vunpack.c.l.b16 %v65
    %v98 = vunpack.c.l.b16 %v66
    %v99 = vunpack.c.l.b16 %v67
    %v100 = vunpack.c.l.b16 %v68
    %v101 = vunpack.c.l.b16 %v69
    %v102 = vunpack.c.l.b16 %v70
    %v103 = vunpack.c.l.b16 %v71
    %v104 = vunpack.c.l.b16 %v72
    %v105 = vpack.c.b16 %v90, %v89
    %v106 = vpack.c.b16 %v92, %v91
    %v107 = vpack.c.b16 %v94, %v93
    %v108 = vpack.c.b16 %v96, %v95
    %v109 = vpack.c.b16 %v98, %v97
    %v110 = vpack.c.b16 %v100, %v99
    %v111 = vpack.c.b16 %v102, %v101
    %v112 = vpack.c.b16 %v104, %v103
    %121 = vmatprep.subr.bf16.mxu0 0
    %122 = vmatpush1.bf16.msra.mxu0 %v112
    %123 = vmatprep.subr.bf16.mxu0 0
    %124 = vmatpush1.bf16.msra.mxu0 %v111
    %125 = vmatprep.subr.bf16.mxu0 0
    %126 = vmatpush1.bf16.msra.mxu0 %v110
    %127 = vmatprep.subr.bf16.mxu0 0
    %128 = vmatpush1.bf16.msra.mxu0 %v109
    %129 = vmatprep.subr.bf16.mxu0 0
    %130 = vmatpush1.bf16.msra.mxu0 %v108
    %131 = vmatprep.subr.bf16.mxu0 0
    %132 = vmatpush1.bf16.msra.mxu0 %v107
    %133 = vmatprep.subr.bf16.mxu0 0
    %134 = vmatpush1.bf16.msra.mxu0 %v106
    %135 = vmatprep.subr.bf16.mxu0 0
    %136 = vmatpush1.bf16.msra.mxu0 %v105
    %137 = vmatprep.subr.bf16.mxu0 0
    %138 = vmatpush2.bf16.msra.mxu0 0
    %139 = vmatprep.subr.bf16.mxu0 0
    %140 = vmatpush2.bf16.msra.mxu0 0
    %141 = vmatprep.subr.bf16.mxu0 0
    %142 = vmatpush2.bf16.msra.mxu0 0
    %143 = vmatprep.subr.bf16.mxu0 0
    %144 = vmatpush2.bf16.msra.mxu0 0
    %145 = vmatprep.subr.bf16.mxu0 0
    %146 = vmatpush2.bf16.msra.mxu0 0
    %147 = vmatprep.subr.bf16.mxu0 0
    %148 = vmatpush2.bf16.msra.mxu0 0
    %149 = vmatprep.subr.bf16.mxu0 0
    %150 = vmatpush2.bf16.msra.mxu0 0
    %151 = vmatprep.subr.bf16.mxu0 0
    %152 = vmatpush2.bf16.msra.mxu0 0
    %153 = vmatprep.mubr.bf16.mxu0 0
    %154 = vmatmul.mubr.bf16.gmra.mxu0 %v56
    %v155 = vpop.f32.mrf.mxu0
    %v156 = vadd.f32 0.0, %v155
    %v157 = vpop.f32.mrf.mxu0
    %v158 = vpop.f32.mrf.mxu0
    %v159 = vpop.f32.mrf.mxu0
    %160 = vdwg.mxu0
    %v161 = vadd.f32 %v55, %v156
    %162 = vst [vmem:[#allocation7] sm:$0xff] %v161
    // Predicated region
    $region26: #{tpu_custom_call.1} parent=1 // pred_check
      _
    $region27: #{tpu_custom_call.1} parent=1 // pred_check_branch
      %164 = sbr.rel (0) target = $region29
    $region28: #{tpu_custom_call.1} parent=1 // pred_region
      %s166 = ssub.s32 128, 128
      %167 = vsyncadd [#allocation4], %s166
      %s169 = sshll.u32 [#allocation7], 4
      %s170 = int_to_ptr.vmem [resolvable:$true] %s169
      %172 = dma.vmem_to_hbm [thread:$0]  %s170, 128, %s3, [#allocation4]
    $region29: #{tpu_custom_call.1} parent=1 // pred_fallthru
      _
    // Predicated region
    $region30: #{tpu_custom_call.1} parent=1 // pred_check
      _
    $region31: #{tpu_custom_call.1} parent=1 // pred_check_branch
      %174 = sbr.rel (0) target = $region33
    $region32: #{tpu_custom_call.1} parent=1 // pred_region
      %175 = dma.done [#allocation4], 128
    $region33: #{tpu_custom_call.1} parent=1 // pred_fallthru
      _
    %176 = vsyncpa [#allocation3], 1
    %177 = vsyncpa [#allocation6], 1
    %178 = vsyncpa [#allocation4], 1

</llo_original>
